<compile_context>
chip_gen: v7x
topology: tpu7x:2x2x1
jax: 0.10.0
libtpu: 0.0.40
codegen_flags: <defaults>
</compile_context>

<pallas_src>
import math

import jax
import jax.numpy as jnp
from jax.experimental import pallas as pl
from jax.experimental.pallas import tpu as pltpu


def _embed_kernel(x_ref, w_ref, pe_ref, o_ref):
    """x_ref: (TB, S, D_in); w_ref: (D_in, d_model); pe_ref: (S, d_model) — already
    contains the Linear bias; o_ref: (TB, S, d_model)."""
    tb, s, d_in = x_ref.shape
    d_model = o_ref.shape[-1]
    # Fuse the batch tile into the matmul M dimension: (TB*S, D_in) @ (D_in, d_model).
    x2 = x_ref[...].reshape(tb * s, d_in)
    y = jnp.dot(x2, w_ref[...], preferred_element_type=jnp.float32)
    y = y.reshape(tb, s, d_model) + pe_ref[...][None, :, :]
    # TODO(synk): training-mode dropout (p=0.1) not implemented; identity (eval mode).
    o_ref[...] = y.astype(o_ref.dtype)


def _pick_batch_tile(batch, seq, target_rows=512):
    """Largest divisor of `batch` giving ~target_rows matmul rows per grid step,
    while keeping >= 2 grid steps for large problems (v7x megacore)."""
    tb = max(1, target_rows // max(seq, 1))
    if batch >= 2 and batch * seq >= 2 * target_rows:
        tb = min(tb, batch // 2)
    tb = max(1, min(tb, batch))
    while batch % tb != 0:
        tb -= 1
    return tb


def prepare_params(weight, bias, pos_encoding, seq_len):
    """One-time constant folds (cache these across calls):
    torch-layout weight (d_model, D_in) -> (D_in, d_model), and bias folded into
    the positional-encoding slice."""
    w_t = jnp.asarray(weight).T                       # (D_in, d_model)
    pe_b = pos_encoding[:seq_len] + bias[None, :]     # (S, d_model)
    return w_t, pe_b


def fixed_temporal_embedding(x, w_t, pe_b):
    """x: (B, S, D_in); w_t: (D_in, d_model) pre-transposed weight;
    pe_b: (S, d_model) = pos_encoding[:S] + bias. Returns (B, S, d_model)."""
    B, S, D_in = x.shape
    d_model = w_t.shape[1]
    assert pe_b.shape == (S, d_model)

    TB = _pick_batch_tile(B, S)
    grid = (B // TB,)

    out_bytes = B * S * d_model * jnp.dtype(x.dtype).itemsize
    cost = pl.CostEstimate(
        flops=2 * B * S * D_in * d_model,
        transcendentals=0,
        bytes_accessed=int(x.size * x.dtype.itemsize
                           + w_t.size * w_t.dtype.itemsize
                           + pe_b.size * pe_b.dtype.itemsize
                           + out_bytes),
    )

    return pl.pallas_call(
        _embed_kernel,
        out_shape=jax.ShapeDtypeStruct((B, S, d_model), x.dtype),
        grid=grid,
        in_specs=[
            pl.BlockSpec((TB, S, D_in), lambda b: (b, 0, 0)),
            pl.BlockSpec((D_in, d_model), lambda b: (0, 0)),   # resident weight
            pl.BlockSpec((S, d_model), lambda b: (0, 0)),      # resident pe + bias
        ],
        out_specs=pl.BlockSpec((TB, S, d_model), lambda b: (b, 0, 0)),
        compiler_params=pltpu.CompilerParams(
            dimension_semantics=("parallel",)),
        cost_estimate=cost,
    )(x, w_t, pe_b)


def make_pos_encoding(max_len, d_model, dtype=jnp.float32):
    position = jnp.arange(0, max_len, dtype=jnp.float32)[:, None]          # (max_len, 1)
    div_term = jnp.exp(jnp.arange(0, d_model, 2, dtype=jnp.float32)
                       * -(math.log(10000.0) / d_model))                   # (d_model/2,)
    pe = jnp.zeros((max_len, d_model), dtype=jnp.float32)
    pe = pe.at[:, 0::2].set(jnp.sin(position * div_term))
    pe = pe.at[:, 1::2].set(jnp.cos(position * div_term))
    return pe.astype(dtype)


if __name__ == "__main__":
    # Small shapes consistent with the module (d_model keeps the module default 256,
    # which also keeps the output lane-dense).
    B, S, D_in, d_model, max_len = 2, 8, 4, 256, 690

    key = jax.random.PRNGKey(0)
    k_x, k_w, k_b = jax.random.split(key, 3)

    x = jax.random.normal(k_x, (B, S, D_in), dtype=jnp.float32)
    # nn.Linear(input_dim, d_model): weight (d_model, input_dim), bias (d_model,)
    bound = 1.0 / math.sqrt(D_in)
    weight = jax.random.uniform(k_w, (d_model, D_in), minval=-bound, maxval=bound,
                                dtype=jnp.float32)
    bias = jax.random.uniform(k_b, (d_model,), minval=-bound, maxval=bound,
                              dtype=jnp.float32)
    pos_encoding = make_pos_encoding(max_len, d_model)

    # One-time parameter preparation (cached across calls in real use).
    w_t, pe_b = prepare_params(weight, bias, pos_encoding, S)

    out = fixed_temporal_embedding(x, w_t, pe_b)
    out = jax.block_until_ready(out)

    # Pure-JAX reference check.
    ref = x @ weight.T + bias + pos_encoding[None, :S, :]
    assert out.shape == (B, S, d_model)
    assert jnp.allclose(out, ref, atol=1e-5, rtol=1e-5)

    print("KERNEL_OK")
</pallas_src>

<mosaic_0001>
module attributes {stable_mosaic.version = 11 : i64} {
  func.func @_embed_kernel(%arg0: i32, %arg1: memref<2x8x4xf32, #tpu.memory_space<vmem>>, %arg2: memref<4x256xf32, #tpu.memory_space<vmem>>, %arg3: memref<8x256xf32, #tpu.memory_space<vmem>>, %arg4: memref<2x8x256xf32, #tpu.memory_space<vmem>>) attributes {dimension_semantics = [#tpu.dimension_semantics<parallel>], iteration_bounds = array<i64: 1>, scalar_prefetch = 0 : i64, scratch_operands = 0 : i64, tpu.core_type = #tpu.core_type<tc>, window_params = [{transform_indices = @transform_0, window_bounds = array<i64: 2, 8, 4>}, {pipeline_mode = #tpu.pipeline_mode<synchronous>, transform_indices = @transform_1, window_bounds = array<i64: 4, 256>}, {pipeline_mode = #tpu.pipeline_mode<synchronous>, transform_indices = @transform_2, window_bounds = array<i64: 8, 256>}, {transform_indices = @transform_3, window_bounds = array<i64: 2, 8, 256>}]} {
    %c0 = arith.constant 0 : index
    %c0_0 = arith.constant 0 : index
    %c0_1 = arith.constant 0 : index
    %0 = vector.load %arg1[%c0, %c0_0, %c0_1] : memref<2x8x4xf32, #tpu.memory_space<vmem>>, vector<2x8x4xf32>
    %1 = vector.shape_cast %0 : vector<2x8x4xf32> to vector<16x4xf32>
    %c0_2 = arith.constant 0 : index
    %c0_3 = arith.constant 0 : index
    %2 = vector.load %arg2[%c0_2, %c0_3] : memref<4x256xf32, #tpu.memory_space<vmem>>, vector<4x256xf32>
    %cst = arith.constant dense<0.000000e+00> : vector<16x256xf32>
    %3 = tpu.matmul %1, %2, %cst {dimension_numbers = #tpu.dot_dimension_numbers<[1], [0], [0], [1], [0, 0, 1, 1], [], []>} : vector<16x4xf32>, vector<4x256xf32>, vector<16x256xf32> -> vector<16x256xf32>
    %4 = vector.shape_cast %3 : vector<16x256xf32> to vector<2x8x256xf32>
    %c0_4 = arith.constant 0 : index
    %c0_5 = arith.constant 0 : index
    %5 = vector.load %arg3[%c0_4, %c0_5] : memref<8x256xf32, #tpu.memory_space<vmem>>, vector<8x256xf32>
    %6 = vector.shape_cast %5 : vector<8x256xf32> to vector<1x8x256xf32>
    %7 = vector.broadcast %6 : vector<1x8x256xf32> to vector<2x8x256xf32>
    %8 = arith.addf %4, %7 : vector<2x8x256xf32>
    %c0_6 = arith.constant 0 : index
    %c0_7 = arith.constant 0 : index
    %c0_8 = arith.constant 0 : index
    %9 = vector.load %arg4[%c0_6, %c0_7, %c0_8] : memref<2x8x256xf32, #tpu.memory_space<vmem>>, vector<2x8x256xf32>
    tpu.vector_store %arg4[%c0_6, %c0_7, %c0_8], %8 {strides = array<i32>} : memref<2x8x256xf32, #tpu.memory_space<vmem>>, vector<2x8x256xf32>,
    return
  }
  func.func @transform_0(%arg0: i32) -> (i32, i32, i32) {
    %c0_i32 = arith.constant 0 : i32
    %c0_i32_0 = arith.constant 0 : i32
    %c0_i32_1 = arith.constant 0 : i32
    return %arg0, %c0_i32, %c0_i32_0 : i32, i32, i32
  }
  func.func @transform_1(%arg0: i32) -> (i32, i32) {
    %c0_i32 = arith.constant 0 : i32
    %c0_i32_0 = arith.constant 0 : i32
    %c0_i32_1 = arith.constant 0 : i32
    return %c0_i32, %c0_i32_0 : i32, i32
  }
  func.func @transform_2(%arg0: i32) -> (i32, i32) {
    %c0_i32 = arith.constant 0 : i32
    %c0_i32_0 = arith.constant 0 : i32
    %c0_i32_1 = arith.constant 0 : i32
    return %c0_i32, %c0_i32_0 : i32, i32
  }
  func.func @transform_3(%arg0: i32) -> (i32, i32, i32) {
    %c0_i32 = arith.constant 0 : i32
    %c0_i32_0 = arith.constant 0 : i32
    %c0_i32_1 = arith.constant 0 : i32
    return %arg0, %c0_i32, %c0_i32_0 : i32, i32, i32
  }
}

</mosaic_0001>

<llo_original>
// kernel: tpu_custom_call.1
$region0: #{tpu_custom_call.1}
  #allocation0 [shape = 'u32[]', space=smem, size = 0x4, offset = 0x4, fixed_abs, tag = 'smem constant byte address 0x4 - core index']
  #allocation1 [shape = 'u32[144,128]{1,0:T(1,128)}', space=vmem, size = 0x12000, scoped, tag = 'internal scratch']
  %s0 = inlined_call_operand.vmem [shape: f32[2,8,4], index: 0, kind: input, shape index: {}]
  %s1 = inlined_call_operand.vmem [shape: f32[4,256], index: 1, kind: input, shape index: {}]
  %s2 = inlined_call_operand.vmem [shape: f32[8,256], index: 2, kind: input, shape index: {}]
  %s3 = inlined_call_operand.hbm [shape: f32[2,8,256], index: 3, kind: output, shape index: {}]
  %s4 = sld [smem:[#allocation0]]
  $region22: #{tpu_custom_call.1} parent=0
    _
  %s6 = ssub.s32 1, %s4
  %s7 = scalar_select 0, %s6, %s4
  $region1: #{tpu_custom_call.1} parent=0
    #allocation2 [shape = 'u8[16384]{0}', space=vmem, size = 0x4000, scoped, tag = 'output window, operand 0, single buffered']
    #allocation3 [shape = 's32[1]{0}', space=sflag, size = 0x4, scoped, tag = 'scoped memory for tpu_custom_call.1']
    %8 = vsyncpa [#allocation3], 0
    // Predicated region
    $region2: #{tpu_custom_call.1} parent=1 // pred_check
      _
    $region3: #{tpu_custom_call.1} parent=1 // pred_check_branch
      %10 = sbr.rel (0) target = $region5
    $region4: #{tpu_custom_call.1} parent=1 // pred_region
      _
    $region5: #{tpu_custom_call.1} parent=1 // pred_fallthru
      _
    // Predicated region
    $region6: #{tpu_custom_call.1} parent=1 // pred_check
      _
    $region7: #{tpu_custom_call.1} parent=1 // pred_check_branch
      %12 = sbr.rel (0) target = $region9
    $region8: #{tpu_custom_call.1} parent=1 // pred_region
      _
    $region9: #{tpu_custom_call.1} parent=1 // pred_fallthru
      _
    // Predicated region
    $region10: #{tpu_custom_call.1} parent=1 // pred_check
      _
    $region11: #{tpu_custom_call.1} parent=1 // pred_check_branch
      %14 = sbr.rel (0) target = $region13
    $region12: #{tpu_custom_call.1} parent=1 // pred_region
      _
    $region13: #{tpu_custom_call.1} parent=1 // pred_fallthru
      _
    %v15 = vld [vmem:[%s0] sm:$0xff]
    %v16 = vld [vmem:[%s0 + $0x8] sm:$0xff]
    %v17 = vld [vmem:[%s1] sm:$0xff]
    %v19 = vcombine.high %v17, %v17
    %vm20 = vcmask 31744
    %v22 = vsel %vm20, %v15, 0
    %v25 = vsel %vm20, %v16, 0
    %vm27 = vcmask 1043456
    %v28 = vsel %vm27, %v17, 0
    %v30 = vsel %vm27, %v19, 0
    %32 = vmatprep.subr.mxu0 %v30
    %33 = vmatpush1.msra.mxu0 %v28
    %34 = vmatprep.subr.mxu0 0.0
    %35 = vmatpush1.msra.mxu0 0.0
    %36 = vmatprep.subr.mxu0 0.0
    %37 = vmatpush1.msra.mxu0 0.0
    %38 = vmatprep.subr.mxu0 0.0
    %39 = vmatpush1.msra.mxu0 0.0
    %40 = vmatprep.subr.mxu0 0.0
    %41 = vmatpush1.msra.mxu0 0.0
    %42 = vmatprep.subr.mxu0 0.0
    %43 = vmatpush1.msra.mxu0 0.0
    %44 = vmatprep.subr.mxu0 0.0
    %45 = vmatpush1.msra.mxu0 0.0
    %46 = vmatprep.subr.mxu0 0.0
    %47 = vmatpush1.msra.mxu0 0.0
    %48 = vmatprep.subr.mxu0 0.0
    %49 = vmatpush1.msra.mxu0 0.0
    %50 = vmatprep.subr.mxu0 0.0
    %51 = vmatpush1.msra.mxu0 0.0
    %52 = vmatprep.subr.mxu0 0.0
    %53 = vmatpush1.msra.mxu0 0.0
    %54 = vmatprep.subr.mxu0 0.0
    %55 = vmatpush1.msra.mxu0 0.0
    %56 = vmatprep.subr.mxu0 0.0
    %57 = vmatpush1.msra.mxu0 0.0
    %58 = vmatprep.subr.mxu0 0.0
    %59 = vmatpush1.msra.mxu0 0.0
    %60 = vmatprep.subr.mxu0 0.0
    %61 = vmatpush1.msra.mxu0 0.0
    %62 = vmatprep.subr.mxu0 0.0
    %63 = vmatpush1.msra.mxu0 0.0
    %64 = vmatprep.subr.mxu0 0.0
    %65 = vmatpush1.msra.mxu0 0.0
    %66 = vmatprep.subr.mxu0 0.0
    %67 = vmatpush1.msra.mxu0 0.0
    %68 = vmatprep.subr.mxu0 0.0
    %69 = vmatpush1.msra.mxu0 0.0
    %70 = vmatprep.subr.mxu0 0.0
    %71 = vmatpush1.msra.mxu0 0.0
    %72 = vmatprep.subr.mxu0 0.0
    %73 = vmatpush1.msra.mxu0 0.0
    %74 = vmatprep.subr.mxu0 0.0
    %75 = vmatpush1.msra.mxu0 0.0
    %76 = vmatprep.subr.mxu0 0.0
    %77 = vmatpush1.msra.mxu0 0.0
    %78 = vmatprep.subr.mxu0 0.0
    %79 = vmatpush1.msra.mxu0 0.0
    %80 = vmatprep.subr.mxu0 0.0
    %81 = vmatpush1.msra.mxu0 0.0
    %82 = vmatprep.subr.mxu0 0.0
    %83 = vmatpush1.msra.mxu0 0.0
    %84 = vmatprep.subr.mxu0 0.0
    %85 = vmatpush1.msra.mxu0 0.0
    %86 = vmatprep.subr.mxu0 0.0
    %87 = vmatpush1.msra.mxu0 0.0
    %88 = vmatprep.subr.mxu0 0.0
    %89 = vmatpush1.msra.mxu0 0.0
    %90 = vmatprep.subr.mxu0 0.0
    %91 = vmatpush1.msra.mxu0 0.0
    %92 = vmatprep.subr.mxu0 0.0
    %93 = vmatpush1.msra.mxu0 0.0
    %94 = vmatprep.subr.mxu0 0.0
    %95 = vmatpush1.msra.mxu0 0.0
    %96 = vmatprep.mubr.f32.mxu0 0.0
    %97 = vmatmul.mubr.f32.gmra.mrb[0].mxu0 %v22
    %v98 = vpop.f32.mrb[0].mxu0
    %v99 = vadd.f32 0.0, %v98
    %v100 = vpop.f32.mrb[0].mxu0
    %v101 = vadd.f32 0.0, %v100
    %102 = vmatprep.mubr.f32.mxu0 0.0
    %103 = vmatmul.mubr.f32.gmra.mrb[0].mxu0 %v25
    %v104 = vpop.f32.mrb[0].mxu0
    %v105 = vadd.f32 0.0, %v104
    %v106 = vpop.f32.mrb[0].mxu0
    %v107 = vadd.f32 0.0, %v106
    %108 = vdwg.mxu0
    %v109 = vld [vmem:[%s2] sm:$0xff]
    %v110 = vld [vmem:[%s2 + $0x8] sm:$0xff]
    %v111 = vadd.f32 %v99, %v109
    %v112 = vadd.f32 %v101, %v110
    %v113 = vadd.f32 %v105, %v109
    %v114 = vadd.f32 %v107, %v110
    %115 = vst [vmem:[#allocation2] sm:$0xff] %v111
    %116 = vst [vmem:[#allocation2 + $0x8] sm:$0xff] %v112
    %117 = vst [vmem:[#allocation2 + $0x10] sm:$0xff] %v113
    %118 = vst [vmem:[#allocation2 + $0x18] sm:$0xff] %v114
    // Predicated region
    $region14: #{tpu_custom_call.1} parent=1 // pred_check
      _
    $region15: #{tpu_custom_call.1} parent=1 // pred_check_branch
      %120 = sbr.rel (0) target = $region17
    $region16: #{tpu_custom_call.1} parent=1 // pred_region
      %s122 = ssub.s32 512, 512
      %123 = vsyncadd [#allocation3], %s122
      %s124 = sshll.u32 [#allocation2], 4
      %s125 = int_to_ptr.vmem [resolvable:$true] %s124
      %130 = dma.vmem_to_hbm [thread:$0]  %s125, 512, %s3, [#allocation3], 256, 256, 16
    $region17: #{tpu_custom_call.1} parent=1 // pred_fallthru
      _
    // Predicated region
    $region18: #{tpu_custom_call.1} parent=1 // pred_check
      _
    $region19: #{tpu_custom_call.1} parent=1 // pred_check_branch
      %132 = sbr.rel (0) target = $region21
    $region20: #{tpu_custom_call.1} parent=1 // pred_region
      %133 = dma.done [#allocation3], 512
    $region21: #{tpu_custom_call.1} parent=1 // pred_fallthru
      _
    %134 = vsyncpa [#allocation3], 1

</llo_original>
